<compile_context>
chip_gen: v5e
topology: v5e:2x2
jax: 0.10.0
libtpu: 0.0.40
codegen_flags: <defaults>
</compile_context>

<pallas_src>
import jax
import jax.numpy as jnp
from jax.experimental import pallas as pl
from jax.experimental.pallas import tpu as pltpu

# Fixed "brightness" scalars of the last transform (baked in as constants).
_SCALE = 1.1
_SHIFT = 0.05


def _make_kernel_2d(c, hw):
    """Kernel for lane-dense 2-D blocks of shape (Bt, C*HW)."""

    def kernel(wf_ref, bf_ref, x_ref, o_ref):
        # wf_ref : SMEM (C*C,) fused channel-mix weights, row-major [o*C + k]
        # bf_ref : SMEM (C,)   fused bias
        # x_ref  : VMEM (Bt, C*HW) input block  (channel k at lanes [k*HW, (k+1)*HW))
        # o_ref  : VMEM (Bt, C*HW) output block
        # Hoist per-channel loads: each channel segment is read once and
        # reused by all C output channels.
        xs = [x_ref[:, k * hw:(k + 1) * hw] for k in range(c)]
        for o in range(c):
            acc = xs[0] * wf_ref[o * c + 0]
            for k in range(1, c):
                acc = acc + xs[k] * wf_ref[o * c + k]
            # Unmasked, lane-dense full-width store (no sublane masking).
            o_ref[:, o * hw:(o + 1) * hw] = jnp.clip(
                acc + bf_ref[o], 0.0, 1.0).astype(o_ref.dtype)

    return kernel


def _make_kernel_3d(c):
    """Fallback kernel for 3-D blocks of shape (Bt, C, hw_tile)."""

    def kernel(wf_ref, bf_ref, x_ref, o_ref):
        xs = [x_ref[:, k, :] for k in range(c)]
        for o in range(c):
            acc = xs[0] * wf_ref[o * c + 0]
            for k in range(1, c):
                acc = acc + xs[k] * wf_ref[o * c + k]
            o_ref[:, o, :] = jnp.clip(acc + bf_ref[o], 0.0, 1.0).astype(o_ref.dtype)

    return kernel


def _num_tensorcores_per_chip():
    """Best-effort detection of multi-TensorCore (megacore) chips."""
    try:
        kind = jax.devices()[0].device_kind.lower()
    except Exception:  # pragma: no cover - defensive; never fail the build
        return 1
    return 2 if any(tag in kind for tag in ("v4", "v5p", "v7")) else 1


def module_compose_forward(x, mean, std, w, bias, *,
                           target_block_bytes=2 << 20, out_dtype=None):
    """x: (N, C, H, W) float32. Returns (N, C, H, W) in out_dtype (default x.dtype)."""
    n, c, h, wdt = x.shape
    hw = h * wdt
    out_dtype = x.dtype if out_dtype is None else out_dtype
    itemsize = jnp.dtype(x.dtype).itemsize

    # --- Fold Normalize + brightness affine into the 1x1 channel mix ---
    #   y = clip(SCALE*(W @ ((x - mean)*inv_std) + bias) + SHIFT, 0, 1)
    #     = clip(W_fused @ x + b_fused, 0, 1)
    mean32 = mean.astype(jnp.float32)
    inv_std = (1.0 / std).astype(jnp.float32)
    w32 = w.astype(jnp.float32)
    bias32 = bias.astype(jnp.float32)
    w_fused = (_SCALE * w32 * inv_std[None, :]).astype(jnp.float32)
    b_fused = (_SCALE * (bias32 - w32 @ (mean32 * inv_std)) + _SHIFT).astype(jnp.float32)
    w_flat = w_fused.reshape(c * c)

    smem_spec = pl.BlockSpec(memory_space=pltpu.MemorySpace.SMEM)
    row_bytes = c * hw * itemsize          # bytes of one image (all channels)
    use_2d = (hw % 128 == 0) and (row_bytes <= target_block_bytes)

    if use_2d:
        # -------- Lane-dense 2-D path: array (N, C*HW), block (Bt, C*HW) ----
        x2 = x.reshape(n, c * hw)          # pure reshape of NCHW
        bt = int(min(n, max(1, target_block_bytes // row_bytes)))
        if _num_tensorcores_per_chip() > 1 and n >= 16:
            # Keep >= 2 grid steps so both TensorCores get work, without
            # breaking the "Bt % 8 == 0 (or == N)" sublane rule.
            bt = min(bt, max(8, ((n // 2) // 8) * 8))
        if bt < n:
            # Full-sublane blocks: Bt multiple of 8, or fall back to the full
            # batch extent when N is too small to split cleanly.
            bt8 = (bt // 8) * 8
            bt = bt8 if bt8 > 0 else n
        grid = (pl.cdiv(n, bt),)           # partial last block is masked by Pallas

        out = pl.pallas_call(
            _make_kernel_2d(c, hw),
            out_shape=jax.ShapeDtypeStruct((n, c * hw), out_dtype),
            grid_spec=pltpu.PrefetchScalarGridSpec(
                num_scalar_prefetch=0,
                grid=grid,
                in_specs=[
                    smem_spec,                                   # W_fused (flat)
                    smem_spec,                                   # b_fused
                    pl.BlockSpec((bt, c * hw), lambda i: (i, 0)),  # x block
                ],
                out_specs=pl.BlockSpec((bt, c * hw), lambda i: (i, 0)),
            ),
            compiler_params=pltpu.CompilerParams(
                dimension_semantics=("parallel",)),
        )(w_flat, b_fused, x2)
        return out.reshape(n, c, h, wdt)

    # -------- Fallback 3-D path: array (N, C, HW), block (Bt, C, hw_tile) ---
    # Used when HW is not a multiple of 128 (lane-segment slicing would be
    # misaligned) or when a single image exceeds the per-block byte budget
    # (tile HW on a second grid axis so VMEM use stays bounded).
    x3 = x.reshape(n, c, hw)
    if hw % 128 == 0:
        hw_tile = int(max(128, min(hw, (target_block_bytes // (c * itemsize) // 128) * 128)))
    else:
        # Lane-dim rule: last block dim must be a multiple of 128 or the full
        # extent; with non-multiple HW we must take the full extent.
        # TODO(synk): very large images with HW % 128 != 0 produce big blocks.
        hw_tile = hw
    tile_bytes = c * hw_tile * itemsize
    bt = int(min(n, max(1, target_block_bytes // max(1, tile_bytes))))
    grid = (pl.cdiv(n, bt), pl.cdiv(hw, hw_tile))

    out = pl.pallas_call(
        _make_kernel_3d(c),
        out_shape=jax.ShapeDtypeStruct((n, c, hw), out_dtype),
        grid_spec=pltpu.PrefetchScalarGridSpec(
            num_scalar_prefetch=0,
            grid=grid,
            in_specs=[
                smem_spec,
                smem_spec,
                pl.BlockSpec((bt, c, hw_tile), lambda i, j: (i, 0, j)),
            ],
            out_specs=pl.BlockSpec((bt, c, hw_tile), lambda i, j: (i, 0, j)),
        ),
        compiler_params=pltpu.CompilerParams(
            dimension_semantics=("parallel", "parallel")),
    )(w_flat, b_fused, x3)
    return out.reshape(n, c, h, wdt)


def _reference(x, mean, std, w, bias):
    n, c, h, wdt = x.shape
    y = (x - mean.reshape(1, c, 1, 1)) / std.reshape(1, c, 1, 1)
    y = jnp.einsum("oc,nchw->nohw", w, y) + bias.reshape(1, c, 1, 1)
    return jnp.clip(_SCALE * y + _SHIFT, 0.0, 1.0)


if __name__ == "__main__":
    key = jax.random.PRNGKey(0)
    kx, kw = jax.random.split(key)

    N, C, H, W = 2, 4, 16, 16
    x = jax.random.uniform(kx, (N, C, H, W), dtype=jnp.float32)

    # Deterministic parameters for the composed transforms.
    mean = jnp.array([0.485, 0.456, 0.406, 0.5], dtype=jnp.float32)
    std = jnp.array([0.229, 0.224, 0.225, 0.25], dtype=jnp.float32)
    w = (0.1 * jax.random.normal(kw, (C, C), dtype=jnp.float32)
         + jnp.eye(C, dtype=jnp.float32))
    bias = jnp.array([0.01, -0.02, 0.03, 0.0], dtype=jnp.float32)

    out = module_compose_forward(x, mean, std, w, bias)
    out = jax.block_until_ready(out)

    ref = _reference(x, mean, std, w, bias)
    assert out.shape == (N, C, H, W)
    assert jnp.allclose(out, ref, atol=1e-5, rtol=1e-5)

    print("KERNEL_OK")
</pallas_src>

<mosaic_0001>
module attributes {stable_mosaic.version = 11 : i64} {
  func.func @kernel(%arg0: i32, %arg1: memref<16xf32, #tpu.memory_space<smem>>, %arg2: memref<4xf32, #tpu.memory_space<smem>>, %arg3: memref<2x1024xf32, #tpu.memory_space<vmem>>, %arg4: memref<2x1024xf32, #tpu.memory_space<vmem>>) attributes {dimension_semantics = [#tpu.dimension_semantics<parallel>], iteration_bounds = array<i64: 1>, scalar_prefetch = 0 : i64, scratch_operands = 0 : i64, tpu.core_type = #tpu.core_type<tc>, window_params = [{transform_indices = @transform_0, window_bounds = array<i64: 16>}, {transform_indices = @transform_1, window_bounds = array<i64: 4>}, {transform_indices = @transform_2, window_bounds = array<i64: 2, 1024>}, {transform_indices = @transform_3, window_bounds = array<i64: 2, 1024>}]} {
    %c0 = arith.constant 0 : index
    %c0_0 = arith.constant 0 : index
    %0 = vector.load %arg3[%c0, %c0_0] : memref<2x1024xf32, #tpu.memory_space<vmem>>, vector<2x256xf32>
    %c0_1 = arith.constant 0 : index
    %c256 = arith.constant 256 : index
    %1 = vector.load %arg3[%c0_1, %c256] : memref<2x1024xf32, #tpu.memory_space<vmem>>, vector<2x256xf32>
    %c0_2 = arith.constant 0 : index
    %c512 = arith.constant 512 : index
    %2 = vector.load %arg3[%c0_2, %c512] : memref<2x1024xf32, #tpu.memory_space<vmem>>, vector<2x256xf32>
    %c0_3 = arith.constant 0 : index
    %c768 = arith.constant 768 : index
    %3 = vector.load %arg3[%c0_3, %c768] : memref<2x1024xf32, #tpu.memory_space<vmem>>, vector<2x256xf32>
    %c0_4 = arith.constant 0 : index
    %4 = memref.load %arg1[%c0_4] : memref<16xf32, #tpu.memory_space<smem>>
    %5 = vector.broadcast %4 : f32 to vector<2x256xf32>
    %6 = arith.mulf %0, %5 : vector<2x256xf32>
    %c1 = arith.constant 1 : index
    %7 = memref.load %arg1[%c1] : memref<16xf32, #tpu.memory_space<smem>>
    %8 = vector.broadcast %7 : f32 to vector<2x256xf32>
    %9 = arith.mulf %1, %8 : vector<2x256xf32>
    %10 = arith.addf %6, %9 : vector<2x256xf32>
    %c2 = arith.constant 2 : index
    %11 = memref.load %arg1[%c2] : memref<16xf32, #tpu.memory_space<smem>>
    %12 = vector.broadcast %11 : f32 to vector<2x256xf32>
    %13 = arith.mulf %2, %12 : vector<2x256xf32>
    %14 = arith.addf %10, %13 : vector<2x256xf32>
    %c3 = arith.constant 3 : index
    %15 = memref.load %arg1[%c3] : memref<16xf32, #tpu.memory_space<smem>>
    %16 = vector.broadcast %15 : f32 to vector<2x256xf32>
    %17 = arith.mulf %3, %16 : vector<2x256xf32>
    %18 = arith.addf %14, %17 : vector<2x256xf32>
    %c0_5 = arith.constant 0 : index
    %19 = memref.load %arg2[%c0_5] : memref<4xf32, #tpu.memory_space<smem>>
    %20 = vector.broadcast %19 : f32 to vector<2x256xf32>
    %21 = arith.addf %18, %20 : vector<2x256xf32>
    %cst = arith.constant 0.000000e+00 : f32
    %cst_6 = arith.constant 1.000000e+00 : f32
    %22 = vector.broadcast %cst : f32 to vector<2x256xf32>
    %23 = arith.maximumf %22, %21 : vector<2x256xf32>
    %24 = vector.broadcast %cst_6 : f32 to vector<2x256xf32>
    %25 = arith.minimumf %24, %23 : vector<2x256xf32>
    %c0_7 = arith.constant 0 : index
    %c0_8 = arith.constant 0 : index
    %26 = vector.load %arg4[%c0_7, %c0_8] : memref<2x1024xf32, #tpu.memory_space<vmem>>, vector<2x256xf32>
    tpu.vector_store %arg4[%c0_7, %c0_8], %25 {strides = array<i32>} : memref<2x1024xf32, #tpu.memory_space<vmem>>, vector<2x256xf32>,
    %c4 = arith.constant 4 : index
    %27 = memref.load %arg1[%c4] : memref<16xf32, #tpu.memory_space<smem>>
    %28 = vector.broadcast %27 : f32 to vector<2x256xf32>
    %29 = arith.mulf %0, %28 : vector<2x256xf32>
    %c5 = arith.constant 5 : index
    %30 = memref.load %arg1[%c5] : memref<16xf32, #tpu.memory_space<smem>>
    %31 = vector.broadcast %30 : f32 to vector<2x256xf32>
    %32 = arith.mulf %1, %31 : vector<2x256xf32>
    %33 = arith.addf %29, %32 : vector<2x256xf32>
    %c6 = arith.constant 6 : index
    %34 = memref.load %arg1[%c6] : memref<16xf32, #tpu.memory_space<smem>>
    %35 = vector.broadcast %34 : f32 to vector<2x256xf32>
    %36 = arith.mulf %2, %35 : vector<2x256xf32>
    %37 = arith.addf %33, %36 : vector<2x256xf32>
    %c7 = arith.constant 7 : index
    %38 = memref.load %arg1[%c7] : memref<16xf32, #tpu.memory_space<smem>>
    %39 = vector.broadcast %38 : f32 to vector<2x256xf32>
    %40 = arith.mulf %3, %39 : vector<2x256xf32>
    %41 = arith.addf %37, %40 : vector<2x256xf32>
    %c1_9 = arith.constant 1 : index
    %42 = memref.load %arg2[%c1_9] : memref<4xf32, #tpu.memory_space<smem>>
    %43 = vector.broadcast %42 : f32 to vector<2x256xf32>
    %44 = arith.addf %41, %43 : vector<2x256xf32>
    %cst_10 = arith.constant 0.000000e+00 : f32
    %cst_11 = arith.constant 1.000000e+00 : f32
    %45 = vector.broadcast %cst_10 : f32 to vector<2x256xf32>
    %46 = arith.maximumf %45, %44 : vector<2x256xf32>
    %47 = vector.broadcast %cst_11 : f32 to vector<2x256xf32>
    %48 = arith.minimumf %47, %46 : vector<2x256xf32>
    %c0_12 = arith.constant 0 : index
    %c256_13 = arith.constant 256 : index
    %49 = vector.load %arg4[%c0_12, %c256_13] : memref<2x1024xf32, #tpu.memory_space<vmem>>, vector<2x256xf32>
    tpu.vector_store %arg4[%c0_12, %c256_13], %48 {strides = array<i32>} : memref<2x1024xf32, #tpu.memory_space<vmem>>, vector<2x256xf32>,
    %c8 = arith.constant 8 : index
    %50 = memref.load %arg1[%c8] : memref<16xf32, #tpu.memory_space<smem>>
    %51 = vector.broadcast %50 : f32 to vector<2x256xf32>
    %52 = arith.mulf %0, %51 : vector<2x256xf32>
    %c9 = arith.constant 9 : index
    %53 = memref.load %arg1[%c9] : memref<16xf32, #tpu.memory_space<smem>>
    %54 = vector.broadcast %53 : f32 to vector<2x256xf32>
    %55 = arith.mulf %1, %54 : vector<2x256xf32>
    %56 = arith.addf %52, %55 : vector<2x256xf32>
    %c10 = arith.constant 10 : index
    %57 = memref.load %arg1[%c10] : memref<16xf32, #tpu.memory_space<smem>>
    %58 = vector.broadcast %57 : f32 to vector<2x256xf32>
    %59 = arith.mulf %2, %58 : vector<2x256xf32>
    %60 = arith.addf %56, %59 : vector<2x256xf32>
    %c11 = arith.constant 11 : index
    %61 = memref.load %arg1[%c11] : memref<16xf32, #tpu.memory_space<smem>>
    %62 = vector.broadcast %61 : f32 to vector<2x256xf32>
    %63 = arith.mulf %3, %62 : vector<2x256xf32>
    %64 = arith.addf %60, %63 : vector<2x256xf32>
    %c2_14 = arith.constant 2 : index
    %65 = memref.load %arg2[%c2_14] : memref<4xf32, #tpu.memory_space<smem>>
    %66 = vector.broadcast %65 : f32 to vector<2x256xf32>
    %67 = arith.addf %64, %66 : vector<2x256xf32>
    %cst_15 = arith.constant 0.000000e+00 : f32
    %cst_16 = arith.constant 1.000000e+00 : f32
    %68 = vector.broadcast %cst_15 : f32 to vector<2x256xf32>
    %69 = arith.maximumf %68, %67 : vector<2x256xf32>
    %70 = vector.broadcast %cst_16 : f32 to vector<2x256xf32>
    %71 = arith.minimumf %70, %69 : vector<2x256xf32>
    %c0_17 = arith.constant 0 : index
    %c512_18 = arith.constant 512 : index
    %72 = vector.load %arg4[%c0_17, %c512_18] : memref<2x1024xf32, #tpu.memory_space<vmem>>, vector<2x256xf32>
    tpu.vector_store %arg4[%c0_17, %c512_18], %71 {strides = array<i32>} : memref<2x1024xf32, #tpu.memory_space<vmem>>, vector<2x256xf32>,
    %c12 = arith.constant 12 : index
    %73 = memref.load %arg1[%c12] : memref<16xf32, #tpu.memory_space<smem>>
    %74 = vector.broadcast %73 : f32 to vector<2x256xf32>
    %75 = arith.mulf %0, %74 : vector<2x256xf32>
    %c13 = arith.constant 13 : index
    %76 = memref.load %arg1[%c13] : memref<16xf32, #tpu.memory_space<smem>>
    %77 = vector.broadcast %76 : f32 to vector<2x256xf32>
    %78 = arith.mulf %1, %77 : vector<2x256xf32>
    %79 = arith.addf %75, %78 : vector<2x256xf32>
    %c14 = arith.constant 14 : index
    %80 = memref.load %arg1[%c14] : memref<16xf32, #tpu.memory_space<smem>>
    %81 = vector.broadcast %80 : f32 to vector<2x256xf32>
    %82 = arith.mulf %2, %81 : vector<2x256xf32>
    %83 = arith.addf %79, %82 : vector<2x256xf32>
    %c15 = arith.constant 15 : index
    %84 = memref.load %arg1[%c15] : memref<16xf32, #tpu.memory_space<smem>>
    %85 = vector.broadcast %84 : f32 to vector<2x256xf32>
    %86 = arith.mulf %3, %85 : vector<2x256xf32>
    %87 = arith.addf %83, %86 : vector<2x256xf32>
    %c3_19 = arith.constant 3 : index
    %88 = memref.load %arg2[%c3_19] : memref<4xf32, #tpu.memory_space<smem>>
    %89 = vector.broadcast %88 : f32 to vector<2x256xf32>
    %90 = arith.addf %87, %89 : vector<2x256xf32>
    %cst_20 = arith.constant 0.000000e+00 : f32
    %cst_21 = arith.constant 1.000000e+00 : f32
    %91 = vector.broadcast %cst_20 : f32 to vector<2x256xf32>
    %92 = arith.maximumf %91, %90 : vector<2x256xf32>
    %93 = vector.broadcast %cst_21 : f32 to vector<2x256xf32>
    %94 = arith.minimumf %93, %92 : vector<2x256xf32>
    %c0_22 = arith.constant 0 : index
    %c768_23 = arith.constant 768 : index
    %95 = vector.load %arg4[%c0_22, %c768_23] : memref<2x1024xf32, #tpu.memory_space<vmem>>, vector<2x256xf32>
    tpu.vector_store %arg4[%c0_22, %c768_23], %94 {strides = array<i32>} : memref<2x1024xf32, #tpu.memory_space<vmem>>, vector<2x256xf32>,
    return
  }
  func.func @transform_0(%arg0: i32) -> i32 {
    %c0_i32 = arith.constant 0 : i32
    %c0_i32_0 = arith.constant 0 : i32
    return %c0_i32 : i32
  }
  func.func @transform_1(%arg0: i32) -> i32 {
    %c0_i32 = arith.constant 0 : i32
    %c0_i32_0 = arith.constant 0 : i32
    return %c0_i32 : i32
  }
  func.func @transform_2(%arg0: i32) -> (i32, i32) {
    %c0_i32 = arith.constant 0 : i32
    %c0_i32_0 = arith.constant 0 : i32
    return %arg0, %c0_i32 : i32, i32
  }
  func.func @transform_3(%arg0: i32) -> (i32, i32) {
    %c0_i32 = arith.constant 0 : i32
    %c0_i32_0 = arith.constant 0 : i32
    return %arg0, %c0_i32 : i32, i32
  }
}

</mosaic_0001>

<llo_original>
// kernel: tpu_custom_call.1
$region0: #{tpu_custom_call.1}
  #allocation0 [shape = 'u32[]', space=smem, size = 0x4, offset = 0x4, fixed_abs, tag = 'smem constant byte address 0x4 - core index']
  #allocation1 [shape = 'u32[72,128]{1,0:T(1,128)}', space=vmem, size = 0x9000, scoped, tag = 'internal scratch']
  %s0 = inlined_call_operand.hbm [shape: f32[16], index: 0, kind: input, shape index: {}]
  %s1 = inlined_call_operand.hbm [shape: f32[4], index: 1, kind: input, shape index: {}]
  %s2 = inlined_call_operand.hbm [shape: f32[2,1024], index: 2, kind: input, shape index: {}]
  %s3 = inlined_call_operand.hbm [shape: f32[2,1024], index: 3, kind: output, shape index: {}]
  %s4 = sld [smem:[#allocation0]]
  $region34: #{tpu_custom_call.1} parent=0
    _
  %s6 = ssub.s32 1, %s4
  %s7 = scalar_select 0, %s6, %s4
  $region1: #{tpu_custom_call.1} parent=0
    #allocation2 [shape = 'u8[512]{0}', space=smem, size = 0x200, scoped, tag = 'input window, operand 0, single buffered']
    #allocation3 [shape = 's32[1]{0}', space=sflag, size = 0x4, scoped, tag = 'scoped memory for tpu_custom_call.1']
    #allocation4 [shape = 's32[1]{0}', space=sflag, size = 0x4, scoped, tag = 'scoped memory for tpu_custom_call.1']
    #allocation5 [shape = 's32[1]{0}', space=sflag, size = 0x4, scoped, tag = 'scoped memory for tpu_custom_call.1']
    #allocation6 [shape = 'u8[512]{0}', space=smem, size = 0x200, scoped, tag = 'input window, operand 1, single buffered']
    #allocation7 [shape = 's32[1]{0}', space=sflag, size = 0x4, scoped, tag = 'scoped memory for tpu_custom_call.1']
    #allocation8 [shape = 'u8[8192]{0}', space=vmem, size = 0x2000, scoped, tag = 'input window, operand 2, single buffered']
    #allocation9 [shape = 'u8[8192]{0}', space=vmem, size = 0x2000, scoped, tag = 'output window, operand 0, single buffered']
    %8 = vsyncpa [#allocation5], 0
    %9 = vsyncpa [#allocation7], 0
    %10 = vsyncpa [#allocation3], 0
    %11 = vsyncpa [#allocation4], 0
    // Predicated region
    $region2: #{tpu_custom_call.1} parent=1 // pred_check
      _
    $region3: #{tpu_custom_call.1} parent=1 // pred_check_branch
      %13 = sbr.rel (0) target = $region5
    $region4: #{tpu_custom_call.1} parent=1 // pred_region
      %15 = vsyncadd [#allocation5], 0
      %s17 = sshll.u32 %s0, 4
      %s18 = int_to_ptr.hbm [resolvable:$true] %s17
      %20 = dma.hbm_to_smem %s18, 16, [#allocation2], [#allocation5]
    $region5: #{tpu_custom_call.1} parent=1 // pred_fallthru
      _
    // Predicated region
    $region6: #{tpu_custom_call.1} parent=1 // pred_check
      _
    $region7: #{tpu_custom_call.1} parent=1 // pred_check_branch
      %22 = sbr.rel (0) target = $region9
    $region8: #{tpu_custom_call.1} parent=1 // pred_region
      %24 = vsyncadd [#allocation7], 0
      %s26 = sshll.u32 %s1, 4
      %s27 = int_to_ptr.hbm [resolvable:$true] %s26
      %29 = dma.hbm_to_smem %s27, 16, [#allocation6], [#allocation7]
    $region9: #{tpu_custom_call.1} parent=1 // pred_fallthru
      _
    // Predicated region
    $region10: #{tpu_custom_call.1} parent=1 // pred_check
      _
    $region11: #{tpu_custom_call.1} parent=1 // pred_check_branch
      %31 = sbr.rel (0) target = $region13
    $region12: #{tpu_custom_call.1} parent=1 // pred_region
      %33 = vsyncadd [#allocation3], 0
      %s35 = sshll.u32 %s2, 4
      %s36 = int_to_ptr.hbm [resolvable:$true] %s35
      %s37 = sshll.u32 [#allocation8], 4
      %s38 = int_to_ptr.vmem [resolvable:$true] %s37
      %40 = dma.hbm_to_vmem [thread:$0]  %s36, 256, %s38, [#allocation3]
    $region13: #{tpu_custom_call.1} parent=1 // pred_fallthru
      _
    // Predicated region
    $region14: #{tpu_custom_call.1} parent=1 // pred_check
      _
    $region15: #{tpu_custom_call.1} parent=1 // pred_check_branch
      %42 = sbr.rel (0) target = $region17
    $region16: #{tpu_custom_call.1} parent=1 // pred_region
      %44 = dma.done [#allocation5], 16
    $region17: #{tpu_custom_call.1} parent=1 // pred_fallthru
      _
    // Predicated region
    $region18: #{tpu_custom_call.1} parent=1 // pred_check
      _
    $region19: #{tpu_custom_call.1} parent=1 // pred_check_branch
      %46 = sbr.rel (0) target = $region21
    $region20: #{tpu_custom_call.1} parent=1 // pred_region
      %48 = dma.done [#allocation7], 16
    $region21: #{tpu_custom_call.1} parent=1 // pred_fallthru
      _
    // Predicated region
    $region22: #{tpu_custom_call.1} parent=1 // pred_check
      _
    $region23: #{tpu_custom_call.1} parent=1 // pred_check_branch
      %50 = sbr.rel (0) target = $region25
    $region24: #{tpu_custom_call.1} parent=1 // pred_region
      %52 = dma.done [#allocation3], 256
    $region25: #{tpu_custom_call.1} parent=1 // pred_fallthru
      _
    %53 = sfence
    %v54 = vld [vmem:[#allocation8] sm:$0xf]
    %v55 = vld [vmem:[#allocation8 + $0x4] sm:$0xf]
    %v56 = vld [vmem:[#allocation8 + $0x8] sm:$0xf]
    %v57 = vld [vmem:[#allocation8 + $0xc] sm:$0xf]
    %s58 = sld [smem:[#allocation2]]
    %v59 = vstv %s58
    %v60 = vmul.f32 %v54, %v59
    %s61 = sld [smem:[#allocation2 + $0x1]]
    %v62 = vstv %s61
    %v63 = vmul.f32 %v55, %v62
    %v64 = vadd.f32 %v60, %v63
    %s65 = sld [smem:[#allocation2 + $0x2]]
    %v66 = vstv %s65
    %v67 = vmul.f32 %v56, %v66
    %v68 = vadd.f32 %v64, %v67
    %s69 = sld [smem:[#allocation2 + $0x3]]
    %v70 = vstv %s69
    %v71 = vmul.f32 %v57, %v70
    %v72 = vadd.f32 %v68, %v71
    %s73 = sld [smem:[#allocation6]]
    %v74 = vstv %s73
    %v75 = vadd.f32 %v72, %v74
    %v76 = vmax.f32 %v75, 0.0
    %v77 = vmin.f32 %v76, 1.0
    %78 = vst [vmem:[#allocation9] sm:$0xf] %v77
    %s79 = sld [smem:[#allocation2 + $0x4]]
    %v80 = vstv %s79
    %v81 = vmul.f32 %v54, %v80
    %s82 = sld [smem:[#allocation2 + $0x5]]
    %v83 = vstv %s82
    %v84 = vmul.f32 %v55, %v83
    %v85 = vadd.f32 %v81, %v84
    %s86 = sld [smem:[#allocation2 + $0x6]]
    %v87 = vstv %s86
    %v88 = vmul.f32 %v56, %v87
    %v89 = vadd.f32 %v85, %v88
    %s90 = sld [smem:[#allocation2 + $0x7]]
    %v91 = vstv %s90
    %v92 = vmul.f32 %v57, %v91
    %v93 = vadd.f32 %v89, %v92
    %s94 = sld [smem:[#allocation6 + $0x1]]
    %v95 = vstv %s94
    %v96 = vadd.f32 %v93, %v95
    %v97 = vmax.f32 %v96, 0.0
    %v98 = vmin.f32 %v97, 1.0
    %99 = vst [vmem:[#allocation9 + $0x4] sm:$0xf] %v98
    %s100 = sld [smem:[#allocation2 + $0x8]]
    %v101 = vstv %s100
    %v102 = vmul.f32 %v54, %v101
    %s103 = sld [smem:[#allocation2 + $0x9]]
    %v104 = vstv %s103
    %v105 = vmul.f32 %v55, %v104
    %v106 = vadd.f32 %v102, %v105
    %s107 = sld [smem:[#allocation2 + $0xa]]
    %v108 = vstv %s107
    %v109 = vmul.f32 %v56, %v108
    %v110 = vadd.f32 %v106, %v109
    %s111 = sld [smem:[#allocation2 + $0xb]]
    %v112 = vstv %s111
    %v113 = vmul.f32 %v57, %v112
    %v114 = vadd.f32 %v110, %v113
    %s115 = sld [smem:[#allocation6 + $0x2]]
    %v116 = vstv %s115
    %v117 = vadd.f32 %v114, %v116
    %v118 = vmax.f32 %v117, 0.0
    %v119 = vmin.f32 %v118, 1.0
    %120 = vst [vmem:[#allocation9 + $0x8] sm:$0xf] %v119
    %s121 = sld [smem:[#allocation2 + $0xc]]
    %v122 = vstv %s121
    %v123 = vmul.f32 %v54, %v122
    %s124 = sld [smem:[#allocation2 + $0xd]]
    %v125 = vstv %s124
    %v126 = vmul.f32 %v55, %v125
    %v127 = vadd.f32 %v123, %v126
    %s128 = sld [smem:[#allocation2 + $0xe]]
    %v129 = vstv %s128
    %v130 = vmul.f32 %v56, %v129
    %v131 = vadd.f32 %v127, %v130
    %s132 = sld [smem:[#allocation2 + $0xf]]
    %v133 = vstv %s132
    %v134 = vmul.f32 %v57, %v133
    %v135 = vadd.f32 %v131, %v134
    %s136 = sld [smem:[#allocation6 + $0x3]]
    %v137 = vstv %s136
    %v138 = vadd.f32 %v135, %v137
    %v139 = vmax.f32 %v138, 0.0
    %v140 = vmin.f32 %v139, 1.0
    %141 = vst [vmem:[#allocation9 + $0xc] sm:$0xf] %v140
    // Predicated region
    $region26: #{tpu_custom_call.1} parent=1 // pred_check
      _
    $region27: #{tpu_custom_call.1} parent=1 // pred_check_branch
      %143 = sbr.rel (0) target = $region29
    $region28: #{tpu_custom_call.1} parent=1 // pred_region
      %145 = vsyncadd [#allocation4], 0
      %s147 = sshll.u32 [#allocation9], 4
      %s148 = int_to_ptr.vmem [resolvable:$true] %s147
      %s149 = sshll.u32 %s3, 4
      %s150 = int_to_ptr.hbm [resolvable:$true] %s149
      %152 = dma.vmem_to_hbm [thread:$0]  %s148, 256, %s150, [#allocation4]
    $region29: #{tpu_custom_call.1} parent=1 // pred_fallthru
      _
    // Predicated region
    $region30: #{tpu_custom_call.1} parent=1 // pred_check
      _
    $region31: #{tpu_custom_call.1} parent=1 // pred_check_branch
      %154 = sbr.rel (0) target = $region33
    $region32: #{tpu_custom_call.1} parent=1 // pred_region
      %156 = dma.done [#allocation4], 256
    $region33: #{tpu_custom_call.1} parent=1 // pred_fallthru
      _
    %157 = vsyncpa [#allocation3], 1
    %158 = vsyncpa [#allocation4], 1
    %159 = vsyncpa [#allocation5], 1
    %160 = vsyncpa [#allocation7], 1

</llo_original>
